<compile_context>
chip_gen: v6e
topology: v6e:2x2x1
jax: 0.10.0
libtpu: 0.0.40
codegen_flags: <defaults>
</compile_context>

<pallas_src>
import functools

import jax
import jax.numpy as jnp
import numpy as np
from jax.experimental import pallas as pl
from jax.experimental.pallas import tpu as pltpu

N_MODEL = 2        # args.n_model
ALPHA_T = 1.0      # args.alpha_t
LANE = 128


def _round_up(x, m):
    return (x + m - 1) // m * m


def _nll_kernel(h_ref, wc_ref, bc_ref, labels_ref, logits0_ref, part_ref,
                *, c_pad, n_model, n_tokens, tile_n):
    """One token tile: fused bf16 classifier matmul + f32 softmax/CE/KL sums."""
    labels = labels_ref[...]                                        # [T, 1] int32
    tile = labels.shape[0]

    # One fused lane-dense matmul for all models (bf16 in, f32 accumulate).
    logits_all = jnp.dot(h_ref[...], wc_ref[...],
                         preferred_element_type=jnp.float32) + bc_ref[...]

    # Model-0 logits, lane-dense store (slice to C deferred to the consumer).
    logits0_ref[...] = logits_all[:, :c_pad]

    # Row validity: in-range token (handles the un-padded ragged tail tile)
    # AND label != -1.  jnp.where keeps garbage/NaN rows out of the sums.
    row = (pl.program_id(0) * tile_n
           + jax.lax.broadcasted_iota(jnp.int32, (tile, 1), 0))
    valid = (row < n_tokens) & (labels != -1)                       # [T, 1]
    n_valid = jnp.sum(jnp.where(valid, 1.0, 0.0))

    col = jax.lax.broadcasted_iota(jnp.int32, (tile, c_pad), 1)
    onehot = col == labels                                          # [T, c_pad] bool

    ce_norm = jnp.zeros((tile, 1), jnp.float32)
    sum_logits = jnp.zeros((tile, c_pad), jnp.float32)
    sum_probs = jnp.zeros((tile, c_pad), jnp.float32)
    sum_logp = jnp.zeros((tile, c_pad), jnp.float32)
    for m in range(n_model):                                        # small & static
        logits = logits_all[:, m * c_pad:(m + 1) * c_pad]           # [T, c_pad]
        mx = jnp.max(logits, axis=-1, keepdims=True)
        exps = jnp.exp(logits - mx)
        denom = jnp.sum(exps, axis=-1, keepdims=True)
        probs = exps * pl.reciprocal(denom)                         # exact 1/x
        ce_norm = ce_norm + mx + jnp.log(denom)                     # sum_m logsumexp_m
        sum_logits = sum_logits + logits
        sum_probs = sum_probs + probs
        sum_logp = sum_logp + jnp.log(probs + 1e-5)                 # matches kl_div eps

    # CE (summed over models): sum_m nll_m = sum_m logsumexp_m - (sum_m logits_m)[y]
    # -> one one-hot select + one cross-lane reduce total.
    gathered = jnp.sum(jnp.where(onehot, sum_logits, 0.0), axis=-1, keepdims=True)
    ce_rows = ce_norm - gathered                                    # [T, 1]
    ce_raw = jnp.sum(jnp.where(valid, ce_rows, 0.0))

    avg_prob = sum_probs * (1.0 / n_model)
    log_avg = jnp.log(avg_prob + 1e-5)
    # sum_m kl(avg, p_m) == sum_c avg * (n_model*log(avg+eps) - sum_m log(p_m+eps))
    kl_rows = jnp.sum(avg_prob * (n_model * log_avg - sum_logp),
                      axis=-1, keepdims=True)                       # [T, 1]
    kl_raw = jnp.sum(jnp.where(valid, kl_rows, 0.0))

    # Per-tile partial sums packed in one lane-dense row: [ce, kl, n_valid, 0...].
    lane = jax.lax.broadcasted_iota(jnp.int32, (1, LANE), 1)
    vals = jnp.where(lane == 0, ce_raw,
           jnp.where(lane == 1, kl_raw,
           jnp.where(lane == 2, n_valid, 0.0))).astype(jnp.float32)
    part_ref[...] = vals[None]                                      # (1, 1, LANE)


def nll_forward(h, W, b, labels, *, tile_n=1024):
    """h: [N, H] (ideally bf16), W: [n_model, H, C], b: [n_model, 1, C],
    labels: [N] int.

    Returns (loss, logits0_dense); logits0_dense is lane-dense
    [N, round_up(C,128)] model-0 logits — slice [:, :C] in the consumer if the
    tight layout is required (slice deferred per perf review).
    """
    N, H = h.shape
    n_model, _, C = W.shape
    c_pad = _round_up(C, LANE)
    width = n_model * c_pad

    # bf16 matmul operands (post-matmul math stays f32 inside the kernel).
    # TODO(synk): the activation producer (backbone) should emit bf16 directly
    # so this cast is a no-op; it only triggers if h arrives wider than bf16.
    if h.dtype != jnp.bfloat16:
        h = h.astype(jnp.bfloat16)

    # tile_n: multiple of 8; for small N pick ~ceil(N/2) so the 'parallel' grid
    # axis has >= 2 steps (v7x has two TensorCores per chip).
    tile_n = max(8, min(tile_n, _round_up(-(-N // 2), 8)))
    num_tiles = -(-N // tile_n)

    labels_2d = labels.reshape(N, 1).astype(jnp.int32)

    # Fuse per-model classifiers into one lane-dense [H, n_model*c_pad] bf16
    # weight (tiny; in a real model precomputed once at init).  Padded class
    # lanes get bias -1e9 so softmax / CE / KL ignore them; bias stays f32.
    W_cat = jnp.pad(W, ((0, 0), (0, 0), (0, c_pad - C)))
    W_cat = jnp.transpose(W_cat, (1, 0, 2)).reshape(H, width).astype(jnp.bfloat16)
    b_cat = jnp.pad(b, ((0, 0), (0, 0), (0, c_pad - C)), constant_values=-1e9)
    b_cat = jnp.transpose(b_cat, (1, 0, 2)).reshape(1, width).astype(jnp.float32)

    kernel = functools.partial(_nll_kernel, c_pad=c_pad, n_model=n_model,
                               n_tokens=N, tile_n=tile_n)
    logits0_dense, partials = pl.pallas_call(
        kernel,
        grid=(num_tiles,),
        in_specs=[
            pl.BlockSpec((tile_n, H), lambda i: (i, 0)),        # h tile (bf16)
            pl.BlockSpec((H, width), lambda i: (0, 0)),         # W_cat (resident)
            pl.BlockSpec((1, width), lambda i: (0, 0)),         # b_cat (resident)
            pl.BlockSpec((tile_n, 1), lambda i: (i, 0)),        # labels tile
        ],
        out_specs=(
            pl.BlockSpec((tile_n, c_pad), lambda i: (i, 0)),    # model-0 logits
            pl.BlockSpec((1, 1, LANE), lambda i: (i, 0, 0)),    # partial sums
        ),
        out_shape=(
            jax.ShapeDtypeStruct((N, c_pad), jnp.float32),
            jax.ShapeDtypeStruct((num_tiles, 1, LANE), jnp.float32),
        ),
        compiler_params=pltpu.CompilerParams(
            dimension_semantics=("parallel",),
        ),
    )(h, W_cat, b_cat, labels_2d)

    part = partials[:, 0, :]                      # [num_tiles, 128]
    ce_raw = jnp.sum(part[:, 0])
    kl_raw = jnp.sum(part[:, 1])
    n_valid = jnp.sum(part[:, 2])

    # loss = mean_m CE_m + alpha_t * (sum_m kl*mask / n_model) / (n_valid + 1e-3)
    loss = (ce_raw / n_valid) / n_model + ALPHA_T * (kl_raw / n_model) / (n_valid + 0.001)
    return loss, logits0_dense


# TODO(synk): the pretrained AutoModel transformer backbone has no clean Pallas
# equivalent here; it is replaced by a deterministic embedding lookup. Dropout is
# treated as identity (eval mode).  Emits bf16 so the head kernel streams bf16.
def backbone(emb_table, input_ids, attention_mask):
    h = emb_table[input_ids]                                  # [B, L, H]
    h = h * attention_mask[..., None].astype(h.dtype)
    return h.astype(jnp.bfloat16)


def _reference(h, W, b, labels):
    """Pure-JAX f32 reference of NLLModel.forward (labels path)."""
    flat_labels = labels.reshape(-1)
    mask = (flat_labels != -1).astype(jnp.float32)
    logits_list = [h @ W[m] + b[m] for m in range(N_MODEL)]

    def ce(logits):
        logp = jax.nn.log_softmax(logits, -1)
        safe = jnp.where(flat_labels == -1, 0, flat_labels)
        nll = -jnp.take_along_axis(logp, safe[:, None], axis=1)[:, 0]
        return jnp.sum(nll * mask) / jnp.sum(mask)

    loss = sum(ce(l) for l in logits_list) / N_MODEL
    probs = [jax.nn.softmax(l, -1) for l in logits_list]
    avg = sum(probs) / N_MODEL
    kl = lambda p, q: jnp.sum(p * (jnp.log(p + 1e-5) - jnp.log(q + 1e-5)), -1)
    reg = sum(kl(avg, p) * mask for p in probs) / N_MODEL
    reg_loss = jnp.sum(reg) / (jnp.sum(mask) + 0.001)
    return loss + ALPHA_T * reg_loss, logits_list[0]


if __name__ == "__main__":
    key = jax.random.PRNGKey(0)
    B, L, H, C, V = 2, 8, 32, 8, 50   # batch, seq, hidden, num_class, vocab
    k1, k2, k3, k4, k5 = jax.random.split(key, 5)

    # Deterministic parameter init (synthetic, no checkpoint).
    emb_table = jax.random.normal(k1, (V, H), jnp.float32) * 0.1
    W = jax.random.normal(k2, (N_MODEL, H, C), jnp.float32) * 0.05
    b_param = jax.random.normal(k3, (N_MODEL, 1, C), jnp.float32) * 0.01

    input_ids = jax.random.randint(k4, (B, L), 0, V)
    attention_mask = jnp.ones((B, L), jnp.int32)
    labels = jax.random.randint(k5, (B, L), -1, C)          # -1 = ignore_index
    labels = labels.at[0, 0].set(1)                         # ensure >=1 valid label

    h = backbone(emb_table, input_ids, attention_mask).reshape(B * L, H)  # bf16

    loss, logits0_dense = nll_forward(h, W, b_param, labels.reshape(-1))
    jax.block_until_ready((loss, logits0_dense))
    logits0 = logits0_dense[:, :C]    # consumer-side slice, only for the check

    ref_loss, ref_logits0 = _reference(h.astype(jnp.float32), W, b_param, labels)
    assert np.allclose(np.asarray(loss), np.asarray(ref_loss), atol=1e-3, rtol=1e-3)
    assert np.allclose(np.asarray(logits0), np.asarray(ref_logits0), atol=1e-3, rtol=1e-3)

    print("KERNEL_OK")
</pallas_src>

<mosaic_0001>
module attributes {stable_mosaic.version = 11 : i64} {
  func.func @_nll_kernel(%arg0: i32, %arg1: memref<8x32xbf16, #tpu.memory_space<vmem>>, %arg2: memref<32x256xbf16, #tpu.memory_space<vmem>>, %arg3: memref<1x256xf32, #tpu.memory_space<vmem>>, %arg4: memref<8x1xi32, #tpu.memory_space<vmem>>, %arg5: memref<8x128xf32, #tpu.memory_space<vmem>>, %arg6: memref<1x1x128xf32, #tpu.memory_space<vmem>>) attributes {dimension_semantics = [#tpu.dimension_semantics<parallel>], iteration_bounds = array<i64: 2>, scalar_prefetch = 0 : i64, scratch_operands = 0 : i64, tpu.core_type = #tpu.core_type<tc>, window_params = [{transform_indices = @transform_0, window_bounds = array<i64: 8, 32>}, {pipeline_mode = #tpu.pipeline_mode<synchronous>, transform_indices = @transform_1, window_bounds = array<i64: 32, 256>}, {pipeline_mode = #tpu.pipeline_mode<synchronous>, transform_indices = @transform_2, window_bounds = array<i64: 1, 256>}, {transform_indices = @transform_3, window_bounds = array<i64: 8, 1>}, {transform_indices = @transform_4, window_bounds = array<i64: 8, 128>}, {transform_indices = @transform_5, window_bounds = array<i64: 1, 1, 128>}]} {
    %c0 = arith.constant 0 : index
    %c0_0 = arith.constant 0 : index
    %0 = vector.load %arg4[%c0, %c0_0] : memref<8x1xi32, #tpu.memory_space<vmem>>, vector<8x1xi32>
    %c0_1 = arith.constant 0 : index
    %c0_2 = arith.constant 0 : index
    %1 = vector.load %arg1[%c0_1, %c0_2] : memref<8x32xbf16, #tpu.memory_space<vmem>>, vector<8x32xbf16>
    %c0_3 = arith.constant 0 : index
    %c0_4 = arith.constant 0 : index
    %2 = vector.load %arg2[%c0_3, %c0_4] : memref<32x256xbf16, #tpu.memory_space<vmem>>, vector<32x256xbf16>
    %cst = arith.constant dense<0.000000e+00> : vector<8x256xf32>
    %3 = tpu.matmul %1, %2, %cst {dimension_numbers = #tpu.dot_dimension_numbers<[1], [0], [0], [1], [0, 0, 1, 1], [], []>} : vector<8x32xbf16>, vector<32x256xbf16>, vector<8x256xf32> -> vector<8x256xf32>
    %c0_5 = arith.constant 0 : index
    %c0_6 = arith.constant 0 : index
    %4 = vector.load %arg3[%c0_5, %c0_6] : memref<1x256xf32, #tpu.memory_space<vmem>>, vector<1x256xf32>
    %5 = vector.broadcast %4 : vector<1x256xf32> to vector<8x256xf32>
    %6 = arith.addf %3, %5 : vector<8x256xf32>
    %7 = vector.extract_strided_slice %6 {offsets = [0, 0], sizes = [8, 128], strides = [1, 1]} : vector<8x256xf32> to vector<8x128xf32>
    %c0_7 = arith.constant 0 : index
    %c0_8 = arith.constant 0 : index
    %8 = vector.load %arg5[%c0_7, %c0_8] : memref<8x128xf32, #tpu.memory_space<vmem>>, vector<8x128xf32>
    tpu.vector_store %arg5[%c0_7, %c0_8], %7 {strides = array<i32>} : memref<8x128xf32, #tpu.memory_space<vmem>>, vector<8x128xf32>,
    %c8_i32 = arith.constant 8 : i32
    %9 = arith.muli %arg0, %c8_i32 : i32
    %10 = tpu.iota {dimensions = array<i32: 0>} : vector<8x1xi32>
    %11 = vector.broadcast %9 : i32 to vector<8x1xi32>
    %12 = arith.addi %11, %10 : vector<8x1xi32>
    %c16_i32 = arith.constant 16 : i32
    %13 = vector.broadcast %c16_i32 : i32 to vector<8x1xi32>
    %14 = arith.cmpi slt, %12, %13 : vector<8x1xi32>
    %c-1_i32 = arith.constant -1 : i32
    %15 = vector.broadcast %c-1_i32 : i32 to vector<8x1xi32>
    %16 = arith.cmpi ne, %0, %15 : vector<8x1xi32>
    %17 = arith.andi %14, %16 : vector<8x1xi1>
    %cst_9 = arith.constant 1.000000e+00 : f32
    %cst_10 = arith.constant 0.000000e+00 : f32
    %18 = vector.broadcast %cst_9 : f32 to vector<8x1xf32>
    %19 = vector.broadcast %cst_10 : f32 to vector<8x1xf32>
    %20 = arith.select %17, %18, %19 : vector<8x1xi1>, vector<8x1xf32>
    %21 = vector.shape_cast %20 : vector<8x1xf32> to vector<1x8x1xf32>
    %cst_11 = arith.constant dense<0.000000e+00> : vector<1xf32>
    %22 = vector.multi_reduction <add>, %21, %cst_11 [1, 2] : vector<1x8x1xf32> to vector<1xf32>
    %23 = vector.shape_cast %22 : vector<1xf32> to vector<1x1x1xf32>
    %24 = vector.extract %23[0, 0, 0] : f32 from vector<1x1x1xf32>
    %25 = tpu.iota {dimensions = array<i32: 1>} : vector<8x128xi32>
    %26 = vector.broadcast %0 : vector<8x1xi32> to vector<8x128xi32>
    %27 = arith.cmpi eq, %25, %26 : vector<8x128xi32>
    %cst_12 = arith.constant 0.000000e+00 : f32
    %28 = vector.broadcast %cst_12 : f32 to vector<8x1xf32>
    %cst_13 = arith.constant 0.000000e+00 : f32
    %29 = vector.broadcast %cst_13 : f32 to vector<8x128xf32>
    %cst_14 = arith.constant 0.000000e+00 : f32
    %30 = vector.broadcast %cst_14 : f32 to vector<8x128xf32>
    %cst_15 = arith.constant 0.000000e+00 : f32
    %31 = vector.broadcast %cst_15 : f32 to vector<8x128xf32>
    %32 = vector.extract_strided_slice %6 {offsets = [0, 0], sizes = [8, 128], strides = [1, 1]} : vector<8x256xf32> to vector<8x128xf32>
    %cst_16 = arith.constant dense<0xFF800000> : vector<8xf32>
    %33 = vector.multi_reduction <maximumf>, %32, %cst_16 [1] : vector<8x128xf32> to vector<8xf32>
    %34 = vector.shape_cast %33 : vector<8xf32> to vector<8x1xf32>
    %35 = vector.broadcast %34 : vector<8x1xf32> to vector<8x128xf32>
    %36 = arith.subf %32, %35 : vector<8x128xf32>
    %37 = math.exp %36 : vector<8x128xf32>
    %cst_17 = arith.constant dense<0.000000e+00> : vector<8xf32>
    %38 = vector.multi_reduction <add>, %37, %cst_17 [1] : vector<8x128xf32> to vector<8xf32>
    %39 = vector.shape_cast %38 : vector<8xf32> to vector<8x1xf32>
    %40 = tpu.reciprocal %39 : vector<8x1xf32> -> vector<8x1xf32>
    %41 = vector.broadcast %40 : vector<8x1xf32> to vector<8x128xf32>
    %42 = arith.mulf %37, %41 : vector<8x128xf32>
    %43 = arith.addf %28, %34 : vector<8x1xf32>
    %44 = math.log %39 : vector<8x1xf32>
    %45 = arith.addf %43, %44 : vector<8x1xf32>
    %46 = arith.addf %29, %32 : vector<8x128xf32>
    %47 = arith.addf %30, %42 : vector<8x128xf32>
    %cst_18 = arith.constant 9.99999974E-6 : f32
    %48 = vector.broadcast %cst_18 : f32 to vector<8x128xf32>
    %49 = arith.addf %42, %48 : vector<8x128xf32>
    %50 = math.log %49 : vector<8x128xf32>
    %51 = arith.addf %31, %50 : vector<8x128xf32>
    %52 = vector.extract_strided_slice %6 {offsets = [0, 128], sizes = [8, 128], strides = [1, 1]} : vector<8x256xf32> to vector<8x128xf32>
    %cst_19 = arith.constant dense<0xFF800000> : vector<8xf32>
    %53 = vector.multi_reduction <maximumf>, %52, %cst_19 [1] : vector<8x128xf32> to vector<8xf32>
    %54 = vector.shape_cast %53 : vector<8xf32> to vector<8x1xf32>
    %55 = vector.broadcast %54 : vector<8x1xf32> to vector<8x128xf32>
    %56 = arith.subf %52, %55 : vector<8x128xf32>
    %57 = math.exp %56 : vector<8x128xf32>
    %cst_20 = arith.constant dense<0.000000e+00> : vector<8xf32>
    %58 = vector.multi_reduction <add>, %57, %cst_20 [1] : vector<8x128xf32> to vector<8xf32>
    %59 = vector.shape_cast %58 : vector<8xf32> to vector<8x1xf32>
    %60 = tpu.reciprocal %59 : vector<8x1xf32> -> vector<8x1xf32>
    %61 = vector.broadcast %60 : vector<8x1xf32> to vector<8x128xf32>
    %62 = arith.mulf %57, %61 : vector<8x128xf32>
    %63 = arith.addf %45, %54 : vector<8x1xf32>
    %64 = math.log %59 : vector<8x1xf32>
    %65 = arith.addf %63, %64 : vector<8x1xf32>
    %66 = arith.addf %46, %52 : vector<8x128xf32>
    %67 = arith.addf %47, %62 : vector<8x128xf32>
    %cst_21 = arith.constant 9.99999974E-6 : f32
    %68 = vector.broadcast %cst_21 : f32 to vector<8x128xf32>
    %69 = arith.addf %62, %68 : vector<8x128xf32>
    %70 = math.log %69 : vector<8x128xf32>
    %71 = arith.addf %51, %70 : vector<8x128xf32>
    %cst_22 = arith.constant 0.000000e+00 : f32
    %72 = vector.broadcast %cst_22 : f32 to vector<8x128xf32>
    %73 = arith.select %27, %66, %72 : vector<8x128xi1>, vector<8x128xf32>
    %cst_23 = arith.constant dense<0.000000e+00> : vector<8xf32>
    %74 = vector.multi_reduction <add>, %73, %cst_23 [1] : vector<8x128xf32> to vector<8xf32>
    %75 = vector.shape_cast %74 : vector<8xf32> to vector<8x1xf32>
    %76 = arith.subf %65, %75 : vector<8x1xf32>
    %cst_24 = arith.constant 0.000000e+00 : f32
    %77 = vector.broadcast %cst_24 : f32 to vector<8x1xf32>
    %78 = arith.select %17, %76, %77 : vector<8x1xi1>, vector<8x1xf32>
    %79 = vector.shape_cast %78 : vector<8x1xf32> to vector<1x8x1xf32>
    %cst_25 = arith.constant dense<0.000000e+00> : vector<1xf32>
    %80 = vector.multi_reduction <add>, %79, %cst_25 [1, 2] : vector<1x8x1xf32> to vector<1xf32>
    %81 = vector.shape_cast %80 : vector<1xf32> to vector<1x1x1xf32>
    %82 = vector.extract %81[0, 0, 0] : f32 from vector<1x1x1xf32>
    %cst_26 = arith.constant 5.000000e-01 : f32
    %83 = vector.broadcast %cst_26 : f32 to vector<8x128xf32>
    %84 = arith.mulf %67, %83 : vector<8x128xf32>
    %cst_27 = arith.constant 9.99999974E-6 : f32
    %85 = vector.broadcast %cst_27 : f32 to vector<8x128xf32>
    %86 = arith.addf %84, %85 : vector<8x128xf32>
    %87 = math.log %86 : vector<8x128xf32>
    %cst_28 = arith.constant 2.000000e+00 : f32
    %88 = vector.broadcast %cst_28 : f32 to vector<8x128xf32>
    %89 = arith.mulf %88, %87 : vector<8x128xf32>
    %90 = arith.subf %89, %71 : vector<8x128xf32>
    %91 = arith.mulf %84, %90 : vector<8x128xf32>
    %cst_29 = arith.constant dense<0.000000e+00> : vector<8xf32>
    %92 = vector.multi_reduction <add>, %91, %cst_29 [1] : vector<8x128xf32> to vector<8xf32>
    %93 = vector.shape_cast %92 : vector<8xf32> to vector<8x1xf32>
    %cst_30 = arith.constant 0.000000e+00 : f32
    %94 = vector.broadcast %cst_30 : f32 to vector<8x1xf32>
    %95 = arith.select %17, %93, %94 : vector<8x1xi1>, vector<8x1xf32>
    %96 = vector.shape_cast %95 : vector<8x1xf32> to vector<1x8x1xf32>
    %cst_31 = arith.constant dense<0.000000e+00> : vector<1xf32>
    %97 = vector.multi_reduction <add>, %96, %cst_31 [1, 2] : vector<1x8x1xf32> to vector<1xf32>
    %98 = vector.shape_cast %97 : vector<1xf32> to vector<1x1x1xf32>
    %99 = vector.extract %98[0, 0, 0] : f32 from vector<1x1x1xf32>
    %100 = tpu.iota {dimensions = array<i32: 1>} : vector<1x128xi32>
    %c0_i32 = arith.constant 0 : i32
    %101 = vector.broadcast %c0_i32 : i32 to vector<1x128xi32>
    %102 = arith.cmpi eq, %100, %101 : vector<1x128xi32>
    %c1_i32 = arith.constant 1 : i32
    %103 = vector.broadcast %c1_i32 : i32 to vector<1x128xi32>
    %104 = arith.cmpi eq, %100, %103 : vector<1x128xi32>
    %c2_i32 = arith.constant 2 : i32
    %105 = vector.broadcast %c2_i32 : i32 to vector<1x128xi32>
    %106 = arith.cmpi eq, %100, %105 : vector<1x128xi32>
    %cst_32 = arith.constant 0.000000e+00 : f32
    %107 = vector.broadcast %24 : f32 to vector<1x128xf32>
    %108 = vector.broadcast %cst_32 : f32 to vector<1x128xf32>
    %109 = arith.select %106, %107, %108 : vector<1x128xi1>, vector<1x128xf32>
    %110 = vector.broadcast %99 : f32 to vector<1x128xf32>
    %111 = arith.select %104, %110, %109 : vector<1x128xi1>, vector<1x128xf32>
    %112 = vector.broadcast %82 : f32 to vector<1x128xf32>
    %113 = arith.select %102, %112, %111 : vector<1x128xi1>, vector<1x128xf32>
    %114 = vector.shape_cast %113 : vector<1x128xf32> to vector<1x1x128xf32>
    %c0_33 = arith.constant 0 : index
    %c0_34 = arith.constant 0 : index
    %c0_35 = arith.constant 0 : index
    %115 = vector.load %arg6[%c0_33, %c0_34, %c0_35] : memref<1x1x128xf32, #tpu.memory_space<vmem>>, vector<1x1x128xf32>
    tpu.vector_store %arg6[%c0_33, %c0_34, %c0_35], %114 {strides = array<i32>} : memref<1x1x128xf32, #tpu.memory_space<vmem>>, vector<1x1x128xf32>,
    return
  }
  func.func @transform_0(%arg0: i32) -> (i32, i32) {
    %c0_i32 = arith.constant 0 : i32
    %c0_i32_0 = arith.constant 0 : i32
    return %arg0, %c0_i32 : i32, i32
  }
  func.func @transform_1(%arg0: i32) -> (i32, i32) {
    %c0_i32 = arith.constant 0 : i32
    %c0_i32_0 = arith.constant 0 : i32
    %c0_i32_1 = arith.constant 0 : i32
    return %c0_i32, %c0_i32_0 : i32, i32
  }
  func.func @transform_2(%arg0: i32) -> (i32, i32) {
    %c0_i32 = arith.constant 0 : i32
    %c0_i32_0 = arith.constant 0 : i32
    %c0_i32_1 = arith.constant 0 : i32
    return %c0_i32, %c0_i32_0 : i32, i32
  }
  func.func @transform_3(%arg0: i32) -> (i32, i32) {
    %c0_i32 = arith.constant 0 : i32
    %c0_i32_0 = arith.constant 0 : i32
    return %arg0, %c0_i32 : i32, i32
  }
  func.func @transform_4(%arg0: i32) -> (i32, i32) {
    %c0_i32 = arith.constant 0 : i32
    %c0_i32_0 = arith.constant 0 : i32
    return %arg0, %c0_i32 : i32, i32
  }
  func.func @transform_5(%arg0: i32) -> (i32, i32, i32) {
    %c0_i32 = arith.constant 0 : i32
    %c0_i32_0 = arith.constant 0 : i32
    %c0_i32_1 = arith.constant 0 : i32
    return %arg0, %c0_i32, %c0_i32_0 : i32, i32, i32
  }
}

</mosaic_0001>

<llo_original>
// kernel: tpu_custom_call.1
$region0: #{tpu_custom_call.1}
  #allocation0 [shape = 'u32[]', space=smem, size = 0x4, offset = 0x4, fixed_abs, tag = 'smem constant byte address 0x4 - core index']
  #allocation1 [shape = 'u32[144,128]{1,0:T(1,128)}', space=vmem, size = 0x12000, scoped, tag = 'internal scratch']
  %s0 = inlined_call_operand.vmem [shape: bf16[16,32], index: 0, kind: input, shape index: {}]
  %s1 = inlined_call_operand.hbm [shape: bf16[32,256], index: 1, kind: input, shape index: {}]
  %s2 = inlined_call_operand.vmem [shape: f32[1,256], index: 2, kind: input, shape index: {}]
  %s3 = inlined_call_operand.vmem [shape: s32[16,1], index: 3, kind: input, shape index: {}]
  %s4 = inlined_call_operand.hbm [shape: f32[16,128], index: 4, kind: output, shape index: {0}]
  %s5 = inlined_call_operand.hbm [shape: f32[2,1,128], index: 5, kind: output, shape index: {1}]
  %6 = xla_tuple %s4, %s5
  %s7 = sld [smem:[#allocation0]]
  $region61: #{tpu_custom_call.1} parent=0
    _
  %s9 = ssub.s32 1, %s7
  %s10 = scalar_select 0, %s9, %s7
  $region1: #{tpu_custom_call.1} parent=0
    #allocation2 [shape = 'u8[16384]{0}', space=vmem, size = 0x4000, scoped, tag = 'input window, operand 1, single buffered']
    #allocation3 [shape = 's32[2]{0}', space=sflag, size = 0x8, scoped, tag = 'scoped memory for tpu_custom_call.1']
    #allocation4 [shape = 's32[2]{0}', space=sflag, size = 0x8, scoped, tag = 'scoped memory for tpu_custom_call.1']
    #allocation5 [shape = 'u8[8192]{0}', space=vmem, size = 0x2000, scoped, tag = 'output window, operand 0']
    #allocation6 [shape = 'u8[1024]{0}', space=vmem, size = 0x400, scoped, tag = 'output window, operand 1']
    #allocation7 [shape = 's32[2]{0}', space=sflag, size = 0x8, scoped, tag = 'scoped memory for tpu_custom_call.1']
    %11 = vsyncpa [#allocation3], 0
    %12 = vsyncpa [#allocation4], 0
    %s13 = scalar_lea.sflag [#allocation4], 1
    %14 = vsyncpa %s13, 0
    %15 = vsyncpa [#allocation7], 0
    %s16 = scalar_lea.sflag [#allocation7], 1
    %17 = vsyncpa %s16, 0
    loop: start=0, step=1, limit=4
    $region2: #{tpu_custom_call.1} parent=1 // loop_pre_header
      _
    $region3: #{tpu_custom_call.1} parent=1 // loop_header
      %s19 = sphi 0, %s23
      %p20 = scmp.ge.s32.totalorder %s19, 4
      %s29 = sphi 0, %s31
      %s32 = sphi 0, %s29
      %s33 = sphi 0, %s32
      %s49 = sphi 0, %s33
      %s53 = sphi 0, %s53
      %s55 = sphi 0, %s53
      %s56 = sphi 0, %s55
      %s70 = sphi 0, %s56
      %s74 = sphi 0, %s74
      %s76 = sphi 0, %s74
      %s77 = sphi 0, %s76
      %s91 = sphi 0, %s77
      %s97 = sphi 0, %s99
      %s100 = sphi 0, %s97
      %s101 = sphi 0, %s100
      %s117 = sphi 0, %s101
      %s123 = sphi 0, %s125
      %s126 = sphi 0, %s123
      %s127 = sphi 0, %s126
      %s143 = sphi 0, %s127
      %s149 = sphi 0, %s151
      %s152 = sphi 0, %s149
      %s153 = sphi 0, %s152
      %s169 = sphi 0, %s153
    $region4: #{tpu_custom_call.1} parent=1 // loop_header_branch
      %22 = sbr.rel (%p20) target = $region8
    $region5: #{tpu_custom_call.1} parent=1 // loop_body
      %s24 = ssub.s32 %s19, 1
      %s25 = ssub.s32 %s19, 2
      %s26 = sadd.s32 %s19, 1
      %s27 = ssub.s32 %s19, %s26
      %p28 = scmp.eq.s32.totalorder %s27, 0
      %s30 = sadd.s32 %s29, 1
      %s31 = scalar_select %p28, %s29, %s30
      %p34 = pneg %p28
      %p35 = scmp.eq.s32.totalorder %s19, 1
      %p36 = por %p34, %p35
      %p37 = scmp.ne.s32.totalorder %s29, %s32
      %p38 = scmp.eq.s32.totalorder %s19, 0
      %p39 = por %p37, %p38
      %p40 = scmp.ne.s32.totalorder %s29, %s32
      %p41 = scmp.eq.s32.totalorder %s24, 1
      %p42 = por %p40, %p41
      %p43 = scmp.ne.s32.totalorder %s32, %s33
      %p44 = scmp.eq.s32.totalorder %s24, 0
      %p45 = por %p43, %p44
      %p46 = scmp.ne.s32.totalorder %s32, %s33
      %p47 = scmp.eq.s32.totalorder %s25, 1
      %p48 = por %p46, %p47
      %p50 = scmp.ne.s32.totalorder %s33, %s49
      %p51 = scmp.eq.s32.totalorder %s25, 0
      %p52 = por %p50, %p51
      %s54 = sadd.s32 %s53, 1
      %p57 = scmp.eq.s32.totalorder %s19, 1
      %p58 = scmp.ne.s32.totalorder %s53, %s55
      %p59 = scmp.eq.s32.totalorder %s19, 0
      %p60 = por %p58, %p59
      %p61 = scmp.ne.s32.totalorder %s53, %s55
      %p62 = scmp.eq.s32.totalorder %s24, 1
      %p63 = por %p61, %p62
      %p64 = scmp.ne.s32.totalorder %s55, %s56
      %p65 = scmp.eq.s32.totalorder %s24, 0
      %p66 = por %p64, %p65
      %p67 = scmp.ne.s32.totalorder %s55, %s56
      %p68 = scmp.eq.s32.totalorder %s25, 1
      %p69 = por %p67, %p68
      %p71 = scmp.ne.s32.totalorder %s56, %s70
      %p72 = scmp.eq.s32.totalorder %s25, 0
      %p73 = por %p71, %p72
      %s75 = sadd.s32 %s74, 1
      %p78 = scmp.eq.s32.totalorder %s19, 1
      %p79 = scmp.ne.s32.totalorder %s74, %s76
      %p80 = scmp.eq.s32.totalorder %s19, 0
      %p81 = por %p79, %p80
      %p82 = scmp.ne.s32.totalorder %s74, %s76
      %p83 = scmp.eq.s32.totalorder %s24, 1
      %p84 = por %p82, %p83
      %p85 = scmp.ne.s32.totalorder %s76, %s77
      %p86 = scmp.eq.s32.totalorder %s24, 0
      %p87 = por %p85, %p86
      %p88 = scmp.ne.s32.totalorder %s76, %s77
      %p89 = scmp.eq.s32.totalorder %s25, 1
      %p90 = por %p88, %p89
      %p92 = scmp.ne.s32.totalorder %s77, %s91
      %p93 = scmp.eq.s32.totalorder %s25, 0
      %p94 = por %p92, %p93
      %s95 = ssub.s32 %s19, %s26
      %p96 = scmp.eq.s32.totalorder %s95, 0
      %s98 = sadd.s32 %s97, 1
      %s99 = scalar_select %p96, %s97, %s98
      %p102 = pneg %p96
      %p103 = scmp.eq.s32.totalorder %s19, 1
      %p104 = por %p102, %p103
      %p105 = scmp.ne.s32.totalorder %s97, %s100
      %p106 = scmp.eq.s32.totalorder %s19, 0
      %p107 = por %p105, %p106
      %p108 = scmp.ne.s32.totalorder %s97, %s100
      %p109 = scmp.eq.s32.totalorder %s24, 1
      %p110 = por %p108, %p109
      %p111 = scmp.ne.s32.totalorder %s100, %s101
      %p112 = scmp.eq.s32.totalorder %s24, 0
      %p113 = por %p111, %p112
      %p114 = scmp.ne.s32.totalorder %s100, %s101
      %p115 = scmp.eq.s32.totalorder %s25, 1
      %p116 = por %p114, %p115
      %p118 = scmp.ne.s32.totalorder %s101, %s117
      %p119 = scmp.eq.s32.totalorder %s25, 0
      %p120 = por %p118, %p119
      %s121 = ssub.s32 %s19, %s26
      %p122 = scmp.eq.s32.totalorder %s121, 0
      %s124 = sadd.s32 %s123, 1
      %s125 = scalar_select %p122, %s123, %s124
      %p128 = pneg %p122
      %p129 = scmp.eq.s32.totalorder %s19, 1
      %p130 = por %p128, %p129
      %p131 = scmp.ne.s32.totalorder %s123, %s126
      %p132 = scmp.eq.s32.totalorder %s19, 0
      %p133 = por %p131, %p132
      %p134 = scmp.ne.s32.totalorder %s123, %s126
      %p135 = scmp.eq.s32.totalorder %s24, 1
      %p136 = por %p134, %p135
      %p137 = scmp.ne.s32.totalorder %s126, %s127
      %p138 = scmp.eq.s32.totalorder %s24, 0
      %p139 = por %p137, %p138
      %p140 = scmp.ne.s32.totalorder %s126, %s127
      %p141 = scmp.eq.s32.totalorder %s25, 1
      %p142 = por %p140, %p141
      %p144 = scmp.ne.s32.totalorder %s127, %s143
      %p145 = scmp.eq.s32.totalorder %s25, 0
      %p146 = por %p144, %p145
      %s147 = ssub.s32 %s19, %s26
      %p148 = scmp.eq.s32.totalorder %s147, 0
      %s150 = sadd.s32 %s149, 1
      %s151 = scalar_select %p148, %s149, %s150
      %p154 = pneg %p148
      %p155 = scmp.eq.s32.totalorder %s19, 1
      %p156 = por %p154, %p155
      %p157 = scmp.ne.s32.totalorder %s149, %s152
      %p158 = scmp.eq.s32.totalorder %s19, 0
      %p159 = por %p157, %p158
      %p160 = scmp.ne.s32.totalorder %s149, %s152
      %p161 = scmp.eq.s32.totalorder %s24, 1
      %p162 = por %p160, %p161
      %p163 = scmp.ne.s32.totalorder %s152, %s153
      %p164 = scmp.eq.s32.totalorder %s24, 0
      %p165 = por %p163, %p164
      %p166 = scmp.ne.s32.totalorder %s152, %s153
      %p167 = scmp.eq.s32.totalorder %s25, 1
      %p168 = por %p166, %p167
      %p170 = scmp.ne.s32.totalorder %s153, %s169
      %p171 = scmp.eq.s32.totalorder %s25, 0
      %p172 = por %p170, %p171
      %p173 = scmp.le.s32.totalorder 1, %s19
      %p174 = scmp.lt.s32.totalorder %s19, 3
      %p175 = pnand %p173, %p174
      %p176 = pneg %p175
      // Predicated region
      $region9: #{tpu_custom_call.1} parent=5 // pred_check
        _
      $region10: #{tpu_custom_call.1} parent=5 // pred_check_branch
        %178 = sbr.rel (%p175) target = $region12
      $region11: #{tpu_custom_call.1} parent=5 // pred_region
        %s179 = ssub.s32 %s19, 1
        // Predicated region
        $region13: #{tpu_custom_call.1} parent=11 // pred_check
          %p180 = pneg %p66
        $region14: #{tpu_custom_call.1} parent=11 // pred_check_branch
          %182 = sbr.rel (%p180) target = $region16
        $region15: #{tpu_custom_call.1} parent=11 // pred_region
          %s184 = ssub.s32 512, 512
          %185 = vsyncadd [#allocation3], %s184
          %s186 = sshll.u32 [#allocation2], 4
          %s187 = int_to_ptr.vmem [resolvable:$true] %s186
          %192 = dma.hbm_to_vmem [thread:$0]  %s1, 512, %s187, [#allocation3], 128, 128, 8
        $region16: #{tpu_custom_call.1} parent=11 // pred_fallthru
          _
        // Predicated region
        $region17: #{tpu_custom_call.1} parent=11 // pred_check
          %p193 = pneg %p87
        $region18: #{tpu_custom_call.1} parent=11 // pred_check_branch
          %195 = sbr.rel (%p193) target = $region20
        $region19: #{tpu_custom_call.1} parent=11 // pred_region
          _
        $region20: #{tpu_custom_call.1} parent=11 // pred_fallthru
          _
      $region12: #{tpu_custom_call.1} parent=5 // pred_fallthru
        _
      %p196 = scmp.lt.s32.totalorder %s19, 2
      // Predicated region
      $region21: #{tpu_custom_call.1} parent=5 // pred_check
        %p197 = pneg %p196
      $region22: #{tpu_custom_call.1} parent=5 // pred_check_branch
        %199 = sbr.rel (%p197) target = $region24
      $region23: #{tpu_custom_call.1} parent=5 // pred_region
        // Predicated region
        $region25: #{tpu_custom_call.1} parent=23 // pred_check
          %p200 = pneg %p39
        $region26: #{tpu_custom_call.1} parent=23 // pred_check_branch
          %202 = sbr.rel (%p200) target = $region28
        $region27: #{tpu_custom_call.1} parent=23 // pred_region
          %p203 = scmp.lt.s32.totalorder %s19, 1
          %s204 = scalar_select %p203, %s19, 1
          %s205 = smul.addr %s204, 4
          %s206 = scalar_lea.vmem %s0, %s205
        $region28: #{tpu_custom_call.1} parent=23 // pred_fallthru
          _
        // Predicated region
        $region29: #{tpu_custom_call.1} parent=23 // pred_check
          %p207 = pneg %p107
        $region30: #{tpu_custom_call.1} parent=23 // pred_check_branch
          %209 = sbr.rel (%p207) target = $region32
        $region31: #{tpu_custom_call.1} parent=23 // pred_region
          %p210 = scmp.lt.s32.totalorder %s19, 1
          %s211 = scalar_select %p210, %s19, 1
          %s212 = smul.addr %s211, 8
          %s213 = scalar_lea.vmem %s3, %s212
        $region32: #{tpu_custom_call.1} parent=23 // pred_fallthru
          _
      $region24: #{tpu_custom_call.1} parent=5 // pred_fallthru
        _
      %p214 = scmp.le.s32.totalorder 1, %s19
      %p215 = scmp.lt.s32.totalorder %s19, 3
      %p216 = pnand %p214, %p215
      %p217 = pneg %p216
      // Predicated region
      $region33: #{tpu_custom_call.1} parent=5 // pred_check
        _
      $region34: #{tpu_custom_call.1} parent=5 // pred_check_branch
        %219 = sbr.rel (%p216) target = $region36
      $region35: #{tpu_custom_call.1} parent=5 // pred_region
        %s220 = ssub.s32 %s19, 1
        // Predicated region
        $region37: #{tpu_custom_call.1} parent=35 // pred_check
          %p221 = pneg %p66
        $region38: #{tpu_custom_call.1} parent=35 // pred_check_branch
          %223 = sbr.rel (%p221) target = $region40
        $region39: #{tpu_custom_call.1} parent=35 // pred_region
          %224 = dma.done [#allocation3], 512
        $region40: #{tpu_custom_call.1} parent=35 // pred_fallthru
          _
        %p225 = scmp.lt.s32.totalorder %s24, 1
        %s226 = scalar_select %p225, %s24, 1
        %s227 = smul.addr %s226, 4
        %s228 = scalar_lea.vmem %s0, %s227
        %p229 = pneg %p45
        %p230 = pneg %p42
        %p231 = pneg %p66
        %p232 = pneg %p63
        %p233 = pneg %p87
        %p234 = pneg %p84
        %p235 = scmp.lt.s32.totalorder %s24, 1
        %s236 = scalar_select %p235, %s24, 1
        %s237 = smul.addr %s236, 8
        %s238 = scalar_lea.vmem %s3, %s237
        %p239 = pneg %p113
        %p240 = pneg %p110
        %p241 = pneg %p139
        %p242 = pneg %p136
        %s243 = sand.u32 %s126, 1
        %s244 = scalar_lea.sflag [#allocation4], %s243
        %s245 = sand.u32 %s126, 1
        %s246 = smul.addr %s245, 8
        %s247 = scalar_lea.vmem [#allocation5], %s246
        %p248 = pneg %p165
        %p249 = pneg %p162
        %s250 = sand.u32 %s152, 1
        %s251 = scalar_lea.sflag [#allocation7], %s250
        %s252 = sand.u32 %s152, 1
        %s253 = scalar_lea.vmem [#allocation6], %s252
        %p254 = scmp.lt.s32.totalorder %s24, 1
        %s255 = scalar_select %p254, %s24, 1
        %s256 = smul.addr %s255, 4
        %s257 = scalar_lea.vmem %s0, %s256
        %p258 = scmp.lt.s32.totalorder %s24, 1
        %s259 = scalar_select %p258, %s24, 1
        %s260 = smul.addr %s259, 8
        %s261 = scalar_lea.vmem %s3, %s260
        %v263 = vld [vmem:[%s261] sm:$0xff]
        %v264 = vld [vmem:[%s257] sm:$0xf]
        %v265 = vld [vmem:[#allocation2] sm:$0xff]
        %v266 = vld [vmem:[#allocation2 + $0x8] sm:$0xff]
        %v267 = vld [vmem:[#allocation2 + $0x10] sm:$0xff]
        %v268 = vld [vmem:[#allocation2 + $0x18] sm:$0xff]
        %v269 = vld [vmem:[%s2] sm:$0x3]
        %v271 = vlaneseq
        %v272 = vshrl.u32 %v271, 7
        %v273 = vsub.s32 0, %v272
        %v274 = vrot.slane %v269, %v273
        %v275 = vlaneseq
        %v276 = vshrl.u32 %v275, 7
        %v277 = vsub.s32 1, %v276
        %v278 = vrot.slane %v269, %v277
        %v285 = vunpack.c.l.b16 %v265
        %v286 = vunpack.c.h.b16 %v265
        %v287 = vunpack.c.l.b16 %v266
        %v288 = vunpack.c.h.b16 %v266
        %v289 = vunpack.c.l.b16 %v267
        %v290 = vunpack.c.h.b16 %v267
        %v291 = vunpack.c.l.b16 %v268
        %v292 = vunpack.c.h.b16 %v268
        %v293 = vpack.c.b16 %v287, %v285
        %v294 = vpack.c.b16 %v288, %v286
        %v295 = vpack.c.b16 %v291, %v289
        %v296 = vpack.c.b16 %v292, %v290
        %vm301 = vcmask 261120
        %v303 = vsel %vm301, %v264, 0
        %305 = vmatprep.subr.bf16.mxu0 0
        %306 = vmatpush1.bf16.msra.mxu0 0
        %307 = vmatprep.subr.bf16.mxu0 0
        %308 = vmatpush1.bf16.msra.mxu0 0
        %309 = vmatprep.subr.bf16.mxu0 0
        %310 = vmatpush1.bf16.msra.mxu0 0
        %311 = vmatprep.subr.bf16.mxu0 0
        %312 = vmatpush1.bf16.msra.mxu0 0
        %313 = vmatprep.subr.bf16.mxu0 0
        %314 = vmatpush1.bf16.msra.mxu0 0
        %315 = vmatprep.subr.bf16.mxu0 0
        %316 = vmatpush1.bf16.msra.mxu0 0
        %317 = vmatprep.subr.bf16.mxu0 %v296
        %318 = vmatpush1.bf16.msra.mxu0 %v295
        %319 = vmatprep.subr.bf16.mxu0 %v294
        %320 = vmatpush1.bf16.msra.mxu0 %v293
        %321 = vmatprep.subr.bf16.mxu0 0
        %322 = vmatpush2.bf16.msra.mxu0 0
        %323 = vmatprep.subr.bf16.mxu0 0
        %324 = vmatpush2.bf16.msra.mxu0 0
        %325 = vmatprep.subr.bf16.mxu0 0
        %326 = vmatpush2.bf16.msra.mxu0 0
        %327 = vmatprep.subr.bf16.mxu0 0
        %328 = vmatpush2.bf16.msra.mxu0 0
        %329 = vmatprep.subr.bf16.mxu0 0
        %330 = vmatpush2.bf16.msra.mxu0 0
        %331 = vmatprep.subr.bf16.mxu0 0
        %332 = vmatpush2.bf16.msra.mxu0 0
        %333 = vmatprep.subr.bf16.mxu0 0
        %334 = vmatpush2.bf16.msra.mxu0 0
        %335 = vmatprep.subr.bf16.mxu0 0
        %336 = vmatpush2.bf16.msra.mxu0 0
        %337 = vmatprep.mubr.bf16.mxu0 0
        %338 = vmatmul.mubr.bf16.gmra.mxu0 %v303
        %v339 = vpop.f32.mrf.mxu0
        %v340 = vadd.f32 %v274, %v339
        %v341 = vpop.f32.mrf.mxu0
        %v342 = vadd.f32 %v278, %v341
        %v343 = vpop.f32.mrf.mxu0
        %v344 = vpop.f32.mrf.mxu0
        %345 = vdwg.mxu0
        %346 = vst [vmem:[%s247] sm:$0xff] %v340
        %s347 = smul.u32 %s24, 8
        %v348 = vlaneseq
        %v349 = vshrl.u32 %v348, 7
        %v350 = vstv %s347
        %v351 = vadd.s32 %v350, %v349
        %vm352 = vcmp.lt.s32.totalorder %v351, 16
        %vm353 = vcmp.ne.s32.totalorder %v263, 4294967295
        %vm354 = vmand %vm352, %vm353
        %v355 = vsel %vm354, 1.0, 0.0
        %vm356 = vcmask 7168
        %v357 = vsel %vm356, %v355, 0.0
        %358 = vadd.xlane.f32.xlu0 %v357
        %v359 = vpop.xlane.xlu0 %358
        %v360 = vrot.slane %v359, 4
        %v361 = vadd.f32 %v359, %v360
        %v362 = vrot.slane %v361, 2
        %v363 = vadd.f32 %v361, %v362
        %v364 = vrot.slane %v363, 1
        %v365 = vadd.f32 %v363, %v364
        %s366 = vtos %v365
        %v367 = vlaneseq
        %v368 = vand.u32 %v367, 127
        %369 = vset.pattern.permute.xlu0 0
        %370 = vperm.xlu0 %369, %v263
        %v371 = vpop.permute.xlu0 %370
        %vm372 = vcmp.eq.s32.totalorder %v368, %v371
        %373 = vmax.xlane.f32.xlu0 %v340
        %v374 = vpop.xlane.xlu0 %373
        %v375 = vsub.f32 %v340, %v374
        %v376 = vmul.f32 %v375, 1.442695
        %v377 = vpow.pop %v376
        %378 = vadd.xlane.f32.xlu0 %v377
        %v379 = vpop.xlane.xlu0 %378
        %v380 = vrcp.pop %v379
        %v381 = vmul.f32 %v377, %v380
        %v382 = vadd.f32 %v374, 0.0
        %v383 = vlog2.pop %v379
        %v384 = vmul.f32 %v383, 0.6931472
        %v385 = vadd.f32 %v382, %v384
        %v386 = vadd.f32 %v340, 0.0
        %v387 = vadd.f32 %v381, 0.0
        %v388 = vadd.f32 %v381, 1e-05
        %v389 = vlog2.pop %v388
        %v390 = vmul.f32 %v389, 0.6931472
        %v391 = vadd.f32 %v390, 0.0
        %392 = vmax.xlane.f32.xlu0 %v342
        %v393 = vpop.xlane.xlu0 %392
        %v394 = vsub.f32 %v342, %v393
        %v395 = vmul.f32 %v394, 1.442695
        %v396 = vpow.pop %v395
        %397 = vadd.xlane.f32.xlu0 %v396
        %v398 = vpop.xlane.xlu0 %397
        %v399 = vrcp.pop %v398
        %v400 = vmul.f32 %v396, %v399
        %v401 = vadd.f32 %v385, %v393
        %v402 = vlog2.pop %v398
        %v403 = vmul.f32 %v402, 0.6931472
        %v404 = vadd.f32 %v401, %v403
        %v405 = vadd.f32 %v386, %v342
        %v406 = vadd.f32 %v387, %v400
        %v407 = vadd.f32 %v400, 1e-05
        %v408 = vlog2.pop %v407
        %v409 = vmul.f32 %v408, 0.6931472
        %v410 = vadd.f32 %v391, %v409
        %v411 = vsel %vm372, %v405, 0.0
        %412 = vadd.xlane.f32.xlu0 %v411
        %v413 = vpop.xlane.xlu0 %412
        %v414 = vsub.f32 %v404, %v413
        %v415 = vsel %vm354, %v414, 0.0
        %v416 = vsel %vm356, %v415, 0.0
        %417 = vadd.xlane.f32.xlu0 %v416
        %v418 = vpop.xlane.xlu0 %417
        %v419 = vrot.slane %v418, 4
        %v420 = vadd.f32 %v418, %v419
        %v421 = vrot.slane %v420, 2
        %v422 = vadd.f32 %v420, %v421
        %v423 = vrot.slane %v422, 1
        %v424 = vadd.f32 %v422, %v423
        %s425 = vtos %v424
        %v426 = vmul.f32 %v406, 0.5
        %v427 = vadd.f32 %v426, 1e-05
        %v428 = vlog2.pop %v427
        %v429 = vmul.f32 %v428, 0.6931472
        %v430 = vmul.f32 %v429, 2.0
        %v431 = vsub.f32 %v430, %v410
        %v432 = vmul.f32 %v426, %v431
        %433 = vadd.xlane.f32.xlu0 %v432
        %v434 = vpop.xlane.xlu0 %433
        %v435 = vsel %vm354, %v434, 0.0
        %v436 = vsel %vm356, %v435, 0.0
        %437 = vadd.xlane.f32.xlu0 %v436
        %v438 = vpop.xlane.xlu0 %437
        %v439 = vrot.slane %v438, 4
        %v440 = vadd.f32 %v438, %v439
        %v441 = vrot.slane %v440, 2
        %v442 = vadd.f32 %v440, %v441
        %v443 = vrot.slane %v442, 1
        %v444 = vadd.f32 %v442, %v443
        %s445 = vtos %v444
        %vm446 = vcmp.eq.s32.totalorder %v368, 0
        %vm447 = vcmp.eq.s32.totalorder %v368, 1
        %vm448 = vcmp.eq.s32.totalorder %v368, 2
        %v449 = vstv %s366
        %v450 = vsel %vm448, %v449, 0.0
        %v451 = vstv %s445
        %v452 = vsel %vm447, %v451, %v450
        %v453 = vstv %s425
        %v454 = vsel %vm446, %v453, %v452
        %455 = vst [vmem:[%s253] sm:$0x1] %v454
        %s456 = sand.u32 %s126, 1
        %s457 = scalar_lea.sflag [#allocation4], %s456
        %s458 = sand.u32 %s126, 1
        %s459 = smul.addr %s458, 8
        %s460 = scalar_lea.vmem [#allocation5], %s459
        %s461 = sand.u32 %s152, 1
        %s462 = scalar_lea.sflag [#allocation7], %s461
        %s463 = sand.u32 %s152, 1
        %s464 = scalar_lea.vmem [#allocation6], %s463
        // Predicated region
        $region41: #{tpu_custom_call.1} parent=35 // pred_check
          %p465 = pneg %p136
        $region42: #{tpu_custom_call.1} parent=35 // pred_check_branch
          %467 = sbr.rel (%p465) target = $region44
        $region43: #{tpu_custom_call.1} parent=35 // pred_region
          %s469 = ssub.s32 128, 128
          %470 = vsyncadd %s457, %s469
          %s471 = smul.addr %s24, 128
          %s472 = scalar_lea.hbm %s4, %s471
          %s474 = sshll.u32 %s460, 4
          %s475 = int_to_ptr.vmem [resolvable:$true] %s474
          %477 = dma.vmem_to_hbm [thread:$0]  %s475, 128, %s472, %s457
        $region44: #{tpu_custom_call.1} parent=35 // pred_fallthru
          _
        // Predicated region
        $region45: #{tpu_custom_call.1} parent=35 // pred_check
          %p478 = pneg %p162
        $region46: #{tpu_custom_call.1} parent=35 // pred_check_branch
          %480 = sbr.rel (%p478) target = $region48
        $region47: #{tpu_custom_call.1} parent=35 // pred_region
          %s482 = ssub.s32 16, 16
          %483 = vsyncadd %s462, %s482
          %s484 = smul.addr %s24, 16
          %s485 = scalar_lea.hbm %s5, %s484
          %s487 = sshll.u32 %s464, 4
          %s488 = int_to_ptr.vmem [resolvable:$true] %s487
          %490 = dma.vmem_to_hbm [thread:$0]  %s488, 16, %s485, %s462
        $region48: #{tpu_custom_call.1} parent=35 // pred_fallthru
          _
      $region36: #{tpu_custom_call.1} parent=5 // pred_fallthru
        _
      %p491 = scmp.le.s32.totalorder 2, %s19
      // Predicated region
      $region49: #{tpu_custom_call.1} parent=5 // pred_check
        %p492 = pneg %p491
      $region50: #{tpu_custom_call.1} parent=5 // pred_check_branch
        %494 = sbr.rel (%p492) target = $region52
      $region51: #{tpu_custom_call.1} parent=5 // pred_region
        %s495 = ssub.s32 %s19, 2
        // Predicated region
        $region53: #{tpu_custom_call.1} parent=51 // pred_check
          %p496 = pneg %p142
        $region54: #{tpu_custom_call.1} parent=51 // pred_check_branch
          %498 = sbr.rel (%p496) target = $region56
        $region55: #{tpu_custom_call.1} parent=51 // pred_region
          %s499 = sand.u32 %s127, 1
          %s500 = scalar_lea.sflag [#allocation4], %s499
          %s501 = sand.u32 %s127, 1
          %s502 = smul.addr %s501, 8
          %s503 = scalar_lea.vmem [#allocation5], %s502
          %504 = dma.done %s500, 128
        $region56: #{tpu_custom_call.1} parent=51 // pred_fallthru
          _
        // Predicated region
        $region57: #{tpu_custom_call.1} parent=51 // pred_check
          %p505 = pneg %p168
        $region58: #{tpu_custom_call.1} parent=51 // pred_check_branch
          %507 = sbr.rel (%p505) target = $region60
        $region59: #{tpu_custom_call.1} parent=51 // pred_region
          %s508 = sand.u32 %s153, 1
          %s509 = scalar_lea.sflag [#allocation7], %s508
          %s510 = sand.u32 %s153, 1
          %s511 = scalar_lea.vmem [#allocation6], %s510
          %512 = dma.done %s509, 16
        $region60: #{tpu_custom_call.1} parent=51 // pred_fallthru
          _
      $region52: #{tpu_custom_call.1} parent=5 // pred_fallthru
        _
    $region6: #{tpu_custom_call.1} parent=1 // loop_footer
      %s23 = sadd.s32 1, %s19
    $region7: #{tpu_custom_call.1} parent=1 // loop_footer_branch
      %18 = sbr.rel target = $region3
    $region8: #{tpu_custom_call.1} parent=1 // loop_exit
      _
    %513 = vsyncpa [#allocation3], 1
    %s514 = scalar_lea.sflag [#allocation3], 1
    %515 = vsyncpa %s514, 1
    %516 = vsyncpa [#allocation4], 1
    %s517 = scalar_lea.sflag [#allocation4], 1
    %518 = vsyncpa %s517, 1
    %519 = vsyncpa [#allocation7], 1
    %s520 = scalar_lea.sflag [#allocation7], 1
    %521 = vsyncpa %s520, 1

</llo_original>
